<compile_context>
chip_gen: v7x
topology: tpu7x:2x2x1
jax: 0.10.0
libtpu: 0.0.40
codegen_flags: <defaults>
</compile_context>

<pallas_src>
import functools

import jax
import jax.numpy as jnp
from jax.experimental import pallas as pl
from jax.experimental.pallas import tpu as pltpu

HIDDEN = 256


def _cdiv(a, b):
    return -(-a // b)


def _round_up(x, m):
    return ((x + m - 1) // m) * m


def _hw_info():
    """(physical VMEM bytes, TensorCores per chip), with safe fallbacks."""
    vmem_cap, num_tc = 128 << 20, 1
    try:
        info = pltpu.get_tpu_info()
        vmem_cap = int(getattr(info, "vmem_capacity_bytes", vmem_cap))
    except Exception:
        pass
    try:
        kind = jax.devices()[0].device_kind.lower()
    except Exception:
        kind = ""
    if "v7" in kind:                      # v7x: 2 TCs/chip, 64 MiB VMEM per TC
        num_tc = 2
        vmem_cap = min(vmem_cap, 64 << 20)
    return vmem_cap, num_tc


def _choose_tile(B, batch_tile, num_tc):
    """Pick (rows_per_step, grid_steps).

    Fewest steps that fit `batch_tile`, but at least `num_tc` steps (v7x: one per
    TensorCore) when the batch is big enough to be worth splitting.  Multi-step
    tiles are 128-row aligned (clean MXU passes on v5e's 128-wide MXU); a ragged
    trailing block is handled by Pallas boundary masking, never by jnp.pad.
    """
    steps = max(num_tc, _cdiv(B, batch_tile))
    if steps <= 1:
        return B, 1                       # single step: block == whole batch
    tb = _round_up(_cdiv(B, steps), 128)
    if tb >= B:
        return B, 1
    return tb, _cdiv(B, tb)


def _twin_kernel(use_mask, *refs):
    """Fused twin-critic forward (all 6 linear layers, both heads) for one batch tile."""
    if use_mask:
        (sa_ref, m0_ref, m1_ref,
         w14_ref, b14_ref, w2_ref, b2_ref, w5_ref, b5_ref,
         w3p_ref, w6p_ref, b36_ref, q_ref) = refs
    else:
        (sa_ref,
         w14_ref, b14_ref, w2_ref, b2_ref, w5_ref, b5_ref,
         w3p_ref, w6p_ref, b36_ref, q_ref) = refs
        m0_ref = m1_ref = None

    cdt = w14_ref.dtype                   # MXU compute dtype (bf16)
    f32 = jnp.float32

    # Fused layer 1 of both heads: sa @ [w1 | w4] -> (tb, 512), relu.
    h = jnp.dot(sa_ref[...], w14_ref[...], preferred_element_type=f32) + b14_ref[...]
    h = jnp.maximum(h, 0.0)
    h1 = h[:, :HIDDEN]                    # Q1 branch (lane-aligned split)
    h2 = h[:, HIDDEN:]                    # Q2 branch

    # Layers 2 / 5 (256x256 each), f32 accumulation.
    g1 = jnp.dot(h1.astype(cdt), w2_ref[...], preferred_element_type=f32) + b2_ref[...]
    g2 = jnp.dot(h2.astype(cdt), w5_ref[...], preferred_element_type=f32) + b5_ref[...]
    g2 = jnp.maximum(g2, 0.0)             # relu(l5(.))

    if use_mask:
        g1 = m0_ref[...].astype(f32) * g1   # mask[0] * l2(.)
        g2 = m1_ref[...].astype(f32) * g2   # mask[1] * relu(l5(.))
    g1 = jnp.maximum(g1, 0.0)             # relu(mask[0]*l2) / relu(l2)

    # Fused block-diagonal output layer: q[:,0] = g1@w3+b3, q[:,1] = g2@w6+b6
    # -> one lane-denser (tb, 2) store instead of two (tb, 1) masked stores.
    q = (jnp.dot(g1.astype(cdt), w3p_ref[...], preferred_element_type=f32)
         + jnp.dot(g2.astype(cdt), w6p_ref[...], preferred_element_type=f32)
         + b36_ref[...])
    q_ref[...] = q


@functools.partial(jax.jit,
                   static_argnames=("batch_tile", "compute_dtype", "mask_dtype"))
def dropout_twin_critic_forward(state, action, params, mask0=None, mask1=None,
                                batch_tile=2048, compute_dtype=jnp.bfloat16,
                                mask_dtype=None):
    """Pallas forward. state:(B,S) action:(B,A) masks:(B,256)|None -> (B,1),(B,1).

    batch_tile is the main tuning knob (capped automatically by the VMEM model).
    mask_dtype=None auto-picks int8 for bool/int masks, bf16 for float masks
    (exact for {0,1}); pass jnp.float32 for scaled inverted-dropout masks.
    """
    assert (mask0 is None) == (mask1 is None)
    use_mask = mask0 is not None

    (w1, b1, w2, b2, w3, b3, w4, b4, w5, b5, w6, b6) = params
    cdt = jnp.dtype(compute_dtype)
    f32 = jnp.float32
    B, S = state.shape
    A = action.shape[1]

    # ---- fused / cast weights (once per call in XLA, outside the grid loop) ----
    w14 = jnp.concatenate([w1, w4], axis=1).astype(cdt)                  # (S+A, 512)
    b14 = jnp.concatenate([b1, b4], axis=1).astype(f32)                  # (1, 512)
    w2c, w5c = w2.astype(cdt), w5.astype(cdt)
    b2f, b5f = b2.astype(f32), b5.astype(f32)
    w3p = jnp.concatenate([w3, jnp.zeros_like(w3)], axis=1).astype(cdt)  # (256, 2)
    w6p = jnp.concatenate([jnp.zeros_like(w6), w6], axis=1).astype(cdt)  # (256, 2)
    b36 = jnp.concatenate([b3, b6], axis=1).astype(f32)                  # (1, 2)
    weights = [w14, b14, w2c, b2f, w5c, b5f, w3p, w6p, b36]

    # ---- inputs: one bf16 (B, S+A) stream; masks compressed; NO jnp.pad --------
    sa = jnp.concatenate([state, action], axis=1).astype(cdt)
    if use_mask:
        if mask_dtype is not None:
            mdt = jnp.dtype(mask_dtype)
        elif jnp.issubdtype(mask0.dtype, jnp.floating):
            mdt = jnp.dtype(jnp.bfloat16)   # exact for {0,1} dropout masks
        else:
            mdt = jnp.dtype(jnp.int8)       # bool/int masks: minimal HBM traffic
        m0 = mask0.astype(mdt)
        m1 = mask1.astype(mdt)
    else:
        mdt = None

    # ---- honest VMEM model: streamed tiles (x2 dbl-buffer) + f32/bf16 temps ----
    weight_bytes = sum(int(x.size) * jnp.dtype(x.dtype).itemsize for x in weights)
    stream_per_row = (S + A) * cdt.itemsize + 2 * 4                      # sa in, q out
    if use_mask:
        stream_per_row += 2 * HIDDEN * mdt.itemsize
    interm_per_row = (2 * HIDDEN) * 4                                    # h (tb,512) f32
    interm_per_row += (2 * HIDDEN) * 4                                   # g1,g2 f32
    interm_per_row += (4 * HIDDEN) * cdt.itemsize                        # bf16 recasts
    per_row = 2 * stream_per_row + interm_per_row

    vmem_cap, num_tc = _hw_info()
    budget = (100 << 20) if vmem_cap > (64 << 20) else (56 << 20)        # v5e/v6e vs v7x
    max_tb = max(128, ((budget - weight_bytes - (4 << 20)) // per_row) // 128 * 128)

    batch_tile = max(int(batch_tile), 128)
    tb, grid = _choose_tile(B, min(batch_tile, max_tb), num_tc)

    need = weight_bytes + tb * per_row
    vmem_limit = int(min(max(need + need // 2 + (4 << 20), 32 << 20), budget))

    # ---- BlockSpecs -------------------------------------------------------------
    row = lambda n: pl.BlockSpec((tb, n), lambda i: (i, 0))
    inputs = [sa]
    in_specs = [row(S + A)]
    if use_mask:
        inputs += [m0, m1]
        in_specs += [row(HIDDEN), row(HIDDEN)]
    inputs += weights
    in_specs += [pl.BlockSpec(w.shape, lambda i: (0, 0)) for w in weights]  # resident

    q = pl.pallas_call(
        functools.partial(_twin_kernel, use_mask),
        grid=(grid,),
        in_specs=in_specs,
        out_specs=pl.BlockSpec((tb, 2), lambda i: (i, 0)),
        out_shape=jax.ShapeDtypeStruct((B, 2), f32),
        compiler_params=pltpu.CompilerParams(
            dimension_semantics=("parallel",),     # >=2 steps -> both TCs on v7x
            vmem_limit_bytes=vmem_limit,
        ),
    )(*inputs)

    return q[:, 0:1], q[:, 1:2]


def init_params(key, state_dim, action_dim):
    """Deterministic init matching nn.Linear shapes (weights as (in,out), f32)."""
    d = state_dim + action_dim
    dims = [(d, HIDDEN), (HIDDEN, HIDDEN), (HIDDEN, 1),
            (d, HIDDEN), (HIDDEN, HIDDEN), (HIDDEN, 1)]
    params = []
    for (fan_in, fan_out) in dims:
        key, kw, kb = jax.random.split(key, 3)
        bound = 1.0 / (fan_in ** 0.5)       # PyTorch nn.Linear default init range
        w = jax.random.uniform(kw, (fan_in, fan_out), jnp.float32, -bound, bound)
        b = jax.random.uniform(kb, (1, fan_out), jnp.float32, -bound, bound)
        params += [w, b]
    return tuple(params)


def _reference_forward(state, action, params, mask0, mask1, compute_dtype=jnp.bfloat16):
    """Pure-JAX reference replicating the kernel's bf16-input / f32-accum dots."""
    w1, b1, w2, b2, w3, b3, w4, b4, w5, b5, w6, b6 = params
    cdt, f32 = compute_dtype, jnp.float32

    def lin(x, w, b):
        return (jnp.dot(x.astype(cdt), w.astype(cdt),
                        preferred_element_type=f32) + b.astype(f32))

    sa = jnp.concatenate([state, action], axis=1).astype(f32)
    q1 = jnp.maximum(lin(sa, w1, b1), 0.0)
    q1 = lin(q1, w2, b2)
    if mask0 is not None:
        q1 = mask0.astype(cdt).astype(f32) * q1
    q1 = jnp.maximum(q1, 0.0)
    q1 = lin(q1, w3, b3)

    q2 = jnp.maximum(lin(sa, w4, b4), 0.0)
    q2 = jnp.maximum(lin(q2, w5, b5), 0.0)
    if mask1 is not None:
        q2 = mask1.astype(cdt).astype(f32) * q2
    q2 = lin(q2, w6, b6)
    return q1, q2


if __name__ == "__main__":
    state_dim, action_dim = 12, 4

    key = jax.random.PRNGKey(0)
    params = init_params(jax.random.fold_in(key, 1), state_dim, action_dim)

    # (batch, batch_tile):
    #   (8, 2048)   tiny batch, single un-padded grid step
    #   (600, 2048) odd batch size, still one step (no padding at all)
    #   (512, 256)  forced multi-step grid (2 x 256 rows) over the "parallel" axis
    for batch, tile in ((8, 2048), (600, 2048), (512, 256)):
        kb = jax.random.fold_in(key, batch * 10 + tile)
        ks, ka, km = jax.random.split(kb, 3)
        state = jax.random.normal(ks, (batch, state_dim), jnp.float32)
        action = jax.random.normal(ka, (batch, action_dim), jnp.float32)
        drop_b = jax.random.uniform(km, (2, batch, HIDDEN)) > 0.5   # bool masks
        drop_f = drop_b.astype(jnp.float32)                         # float {0,1} masks

        # 1) mask=None path of the PyTorch module: no mask arrays streamed at all.
        q1, q2 = dropout_twin_critic_forward(state, action, params, batch_tile=tile)
        jax.block_until_ready((q1, q2))
        r1, r2 = _reference_forward(state, action, params, None, None)
        assert q1.shape == (batch, 1) and q2.shape == (batch, 1)
        assert jnp.allclose(q1, r1, atol=1e-2, rtol=1e-2)
        assert jnp.allclose(q2, r2, atol=1e-2, rtol=1e-2)

        # 2) float {0,1} dropout masks (streamed as bf16, multiplied in f32).
        q1m, q2m = dropout_twin_critic_forward(state, action, params,
                                               drop_f[0], drop_f[1], batch_tile=tile)
        jax.block_until_ready((q1m, q2m))
        r1m, r2m = _reference_forward(state, action, params, drop_f[0], drop_f[1])
        assert jnp.allclose(q1m, r1m, atol=1e-2, rtol=1e-2)
        assert jnp.allclose(q2m, r2m, atol=1e-2, rtol=1e-2)

        # 3) boolean masks: the int8-streaming fast path (same math, 2-8x fewer bytes).
        q1b, q2b = dropout_twin_critic_forward(state, action, params,
                                               drop_b[0], drop_b[1], batch_tile=tile)
        jax.block_until_ready((q1b, q2b))
        assert jnp.allclose(q1b, r1m, atol=1e-2, rtol=1e-2)
        assert jnp.allclose(q2b, r2m, atol=1e-2, rtol=1e-2)

    print("KERNEL_OK")
</pallas_src>

<mosaic_0001>
module attributes {stable_mosaic.version = 11 : i64} {
  func.func @_twin_kernel(%arg0: i32, %arg1: memref<8x16xbf16, #tpu.memory_space<vmem>>, %arg2: memref<16x512xbf16, #tpu.memory_space<vmem>>, %arg3: memref<1x512xf32, #tpu.memory_space<vmem>>, %arg4: memref<256x256xbf16, #tpu.memory_space<vmem>>, %arg5: memref<1x256xf32, #tpu.memory_space<vmem>>, %arg6: memref<256x256xbf16, #tpu.memory_space<vmem>>, %arg7: memref<1x256xf32, #tpu.memory_space<vmem>>, %arg8: memref<256x2xbf16, #tpu.memory_space<vmem>>, %arg9: memref<256x2xbf16, #tpu.memory_space<vmem>>, %arg10: memref<1x2xf32, #tpu.memory_space<vmem>>, %arg11: memref<8x2xf32, #tpu.memory_space<vmem>>) attributes {dimension_semantics = [#tpu.dimension_semantics<parallel>], iteration_bounds = array<i64: 1>, scalar_prefetch = 0 : i64, scratch_operands = 0 : i64, tpu.core_type = #tpu.core_type<tc>, window_params = [{transform_indices = @transform_0, window_bounds = array<i64: 8, 16>}, {pipeline_mode = #tpu.pipeline_mode<synchronous>, transform_indices = @transform_1, window_bounds = array<i64: 16, 512>}, {pipeline_mode = #tpu.pipeline_mode<synchronous>, transform_indices = @transform_2, window_bounds = array<i64: 1, 512>}, {pipeline_mode = #tpu.pipeline_mode<synchronous>, transform_indices = @transform_3, window_bounds = array<i64: 256, 256>}, {pipeline_mode = #tpu.pipeline_mode<synchronous>, transform_indices = @transform_4, window_bounds = array<i64: 1, 256>}, {pipeline_mode = #tpu.pipeline_mode<synchronous>, transform_indices = @transform_5, window_bounds = array<i64: 256, 256>}, {pipeline_mode = #tpu.pipeline_mode<synchronous>, transform_indices = @transform_6, window_bounds = array<i64: 1, 256>}, {pipeline_mode = #tpu.pipeline_mode<synchronous>, transform_indices = @transform_7, window_bounds = array<i64: 256, 2>}, {pipeline_mode = #tpu.pipeline_mode<synchronous>, transform_indices = @transform_8, window_bounds = array<i64: 256, 2>}, {pipeline_mode = #tpu.pipeline_mode<synchronous>, transform_indices = @transform_9, window_bounds = array<i64: 1, 2>}, {transform_indices = @transform_10, window_bounds = array<i64: 8, 2>}]} {
    %c0 = arith.constant 0 : index
    %c0_0 = arith.constant 0 : index
    %0 = vector.load %arg1[%c0, %c0_0] : memref<8x16xbf16, #tpu.memory_space<vmem>>, vector<8x16xbf16>
    %c0_1 = arith.constant 0 : index
    %c0_2 = arith.constant 0 : index
    %1 = vector.load %arg2[%c0_1, %c0_2] : memref<16x512xbf16, #tpu.memory_space<vmem>>, vector<16x512xbf16>
    %cst = arith.constant dense<0.000000e+00> : vector<8x512xf32>
    %2 = tpu.matmul %0, %1, %cst {dimension_numbers = #tpu.dot_dimension_numbers<[1], [0], [0], [1], [0, 0, 1, 1], [], []>} : vector<8x16xbf16>, vector<16x512xbf16>, vector<8x512xf32> -> vector<8x512xf32>
    %c0_3 = arith.constant 0 : index
    %c0_4 = arith.constant 0 : index
    %3 = vector.load %arg3[%c0_3, %c0_4] : memref<1x512xf32, #tpu.memory_space<vmem>>, vector<1x512xf32>
    %4 = vector.broadcast %3 : vector<1x512xf32> to vector<8x512xf32>
    %5 = arith.addf %2, %4 : vector<8x512xf32>
    %cst_5 = arith.constant 0.000000e+00 : f32
    %6 = vector.broadcast %cst_5 : f32 to vector<8x512xf32>
    %7 = arith.maximumf %5, %6 : vector<8x512xf32>
    %8 = vector.extract_strided_slice %7 {offsets = [0, 0], sizes = [8, 256], strides = [1, 1]} : vector<8x512xf32> to vector<8x256xf32>
    %9 = vector.extract_strided_slice %7 {offsets = [0, 256], sizes = [8, 256], strides = [1, 1]} : vector<8x512xf32> to vector<8x256xf32>
    %10 = arith.truncf %8 : vector<8x256xf32> to vector<8x256xbf16>
    %c0_6 = arith.constant 0 : index
    %c0_7 = arith.constant 0 : index
    %11 = vector.load %arg4[%c0_6, %c0_7] : memref<256x256xbf16, #tpu.memory_space<vmem>>, vector<256x256xbf16>
    %cst_8 = arith.constant dense<0.000000e+00> : vector<8x256xf32>
    %12 = tpu.matmul %10, %11, %cst_8 {dimension_numbers = #tpu.dot_dimension_numbers<[1], [0], [0], [1], [0, 0, 1, 1], [], []>} : vector<8x256xbf16>, vector<256x256xbf16>, vector<8x256xf32> -> vector<8x256xf32>
    %c0_9 = arith.constant 0 : index
    %c0_10 = arith.constant 0 : index
    %13 = vector.load %arg5[%c0_9, %c0_10] : memref<1x256xf32, #tpu.memory_space<vmem>>, vector<1x256xf32>
    %14 = vector.broadcast %13 : vector<1x256xf32> to vector<8x256xf32>
    %15 = arith.addf %12, %14 : vector<8x256xf32>
    %16 = arith.truncf %9 : vector<8x256xf32> to vector<8x256xbf16>
    %c0_11 = arith.constant 0 : index
    %c0_12 = arith.constant 0 : index
    %17 = vector.load %arg6[%c0_11, %c0_12] : memref<256x256xbf16, #tpu.memory_space<vmem>>, vector<256x256xbf16>
    %cst_13 = arith.constant dense<0.000000e+00> : vector<8x256xf32>
    %18 = tpu.matmul %16, %17, %cst_13 {dimension_numbers = #tpu.dot_dimension_numbers<[1], [0], [0], [1], [0, 0, 1, 1], [], []>} : vector<8x256xbf16>, vector<256x256xbf16>, vector<8x256xf32> -> vector<8x256xf32>
    %c0_14 = arith.constant 0 : index
    %c0_15 = arith.constant 0 : index
    %19 = vector.load %arg7[%c0_14, %c0_15] : memref<1x256xf32, #tpu.memory_space<vmem>>, vector<1x256xf32>
    %20 = vector.broadcast %19 : vector<1x256xf32> to vector<8x256xf32>
    %21 = arith.addf %18, %20 : vector<8x256xf32>
    %cst_16 = arith.constant 0.000000e+00 : f32
    %22 = vector.broadcast %cst_16 : f32 to vector<8x256xf32>
    %23 = arith.maximumf %21, %22 : vector<8x256xf32>
    %cst_17 = arith.constant 0.000000e+00 : f32
    %24 = vector.broadcast %cst_17 : f32 to vector<8x256xf32>
    %25 = arith.maximumf %15, %24 : vector<8x256xf32>
    %26 = arith.truncf %25 : vector<8x256xf32> to vector<8x256xbf16>
    %c0_18 = arith.constant 0 : index
    %c0_19 = arith.constant 0 : index
    %27 = vector.load %arg8[%c0_18, %c0_19] : memref<256x2xbf16, #tpu.memory_space<vmem>>, vector<256x2xbf16>
    %cst_20 = arith.constant dense<0.000000e+00> : vector<8x2xf32>
    %28 = tpu.matmul %26, %27, %cst_20 {dimension_numbers = #tpu.dot_dimension_numbers<[1], [0], [0], [1], [0, 0, 1, 1], [], []>} : vector<8x256xbf16>, vector<256x2xbf16>, vector<8x2xf32> -> vector<8x2xf32>
    %29 = arith.truncf %23 : vector<8x256xf32> to vector<8x256xbf16>
    %c0_21 = arith.constant 0 : index
    %c0_22 = arith.constant 0 : index
    %30 = vector.load %arg9[%c0_21, %c0_22] : memref<256x2xbf16, #tpu.memory_space<vmem>>, vector<256x2xbf16>
    %cst_23 = arith.constant dense<0.000000e+00> : vector<8x2xf32>
    %31 = tpu.matmul %29, %30, %cst_23 {dimension_numbers = #tpu.dot_dimension_numbers<[1], [0], [0], [1], [0, 0, 1, 1], [], []>} : vector<8x256xbf16>, vector<256x2xbf16>, vector<8x2xf32> -> vector<8x2xf32>
    %32 = arith.addf %28, %31 : vector<8x2xf32>
    %c0_24 = arith.constant 0 : index
    %c0_25 = arith.constant 0 : index
    %33 = vector.load %arg10[%c0_24, %c0_25] : memref<1x2xf32, #tpu.memory_space<vmem>>, vector<1x2xf32>
    %34 = vector.broadcast %33 : vector<1x2xf32> to vector<8x2xf32>
    %35 = arith.addf %32, %34 : vector<8x2xf32>
    %c0_26 = arith.constant 0 : index
    %c0_27 = arith.constant 0 : index
    %36 = vector.load %arg11[%c0_26, %c0_27] : memref<8x2xf32, #tpu.memory_space<vmem>>, vector<8x2xf32>
    tpu.vector_store %arg11[%c0_26, %c0_27], %35 {strides = array<i32>} : memref<8x2xf32, #tpu.memory_space<vmem>>, vector<8x2xf32>,
    return
  }
  func.func @transform_0(%arg0: i32) -> (i32, i32) {
    %c0_i32 = arith.constant 0 : i32
    %c0_i32_0 = arith.constant 0 : i32
    return %arg0, %c0_i32 : i32, i32
  }
  func.func @transform_1(%arg0: i32) -> (i32, i32) {
    %c0_i32 = arith.constant 0 : i32
    %c0_i32_0 = arith.constant 0 : i32
    %c0_i32_1 = arith.constant 0 : i32
    return %c0_i32, %c0_i32_0 : i32, i32
  }
  func.func @transform_2(%arg0: i32) -> (i32, i32) {
    %c0_i32 = arith.constant 0 : i32
    %c0_i32_0 = arith.constant 0 : i32
    %c0_i32_1 = arith.constant 0 : i32
    return %c0_i32, %c0_i32_0 : i32, i32
  }
  func.func @transform_3(%arg0: i32) -> (i32, i32) {
    %c0_i32 = arith.constant 0 : i32
    %c0_i32_0 = arith.constant 0 : i32
    %c0_i32_1 = arith.constant 0 : i32
    return %c0_i32, %c0_i32_0 : i32, i32
  }
  func.func @transform_4(%arg0: i32) -> (i32, i32) {
    %c0_i32 = arith.constant 0 : i32
    %c0_i32_0 = arith.constant 0 : i32
    %c0_i32_1 = arith.constant 0 : i32
    return %c0_i32, %c0_i32_0 : i32, i32
  }
  func.func @transform_5(%arg0: i32) -> (i32, i32) {
    %c0_i32 = arith.constant 0 : i32
    %c0_i32_0 = arith.constant 0 : i32
    %c0_i32_1 = arith.constant 0 : i32
    return %c0_i32, %c0_i32_0 : i32, i32
  }
  func.func @transform_6(%arg0: i32) -> (i32, i32) {
    %c0_i32 = arith.constant 0 : i32
    %c0_i32_0 = arith.constant 0 : i32
    %c0_i32_1 = arith.constant 0 : i32
    return %c0_i32, %c0_i32_0 : i32, i32
  }
  func.func @transform_7(%arg0: i32) -> (i32, i32) {
    %c0_i32 = arith.constant 0 : i32
    %c0_i32_0 = arith.constant 0 : i32
    %c0_i32_1 = arith.constant 0 : i32
    return %c0_i32, %c0_i32_0 : i32, i32
  }
  func.func @transform_8(%arg0: i32) -> (i32, i32) {
    %c0_i32 = arith.constant 0 : i32
    %c0_i32_0 = arith.constant 0 : i32
    %c0_i32_1 = arith.constant 0 : i32
    return %c0_i32, %c0_i32_0 : i32, i32
  }
  func.func @transform_9(%arg0: i32) -> (i32, i32) {
    %c0_i32 = arith.constant 0 : i32
    %c0_i32_0 = arith.constant 0 : i32
    %c0_i32_1 = arith.constant 0 : i32
    return %c0_i32, %c0_i32_0 : i32, i32
  }
  func.func @transform_10(%arg0: i32) -> (i32, i32) {
    %c0_i32 = arith.constant 0 : i32
    %c0_i32_0 = arith.constant 0 : i32
    return %arg0, %c0_i32 : i32, i32
  }
}

</mosaic_0001>

<llo_original>
// kernel: dropout_twin_critic_forward.1
$region0: #{dropout_twin_critic_forward.1}
  #allocation0 [shape = 'u32[]', space=smem, size = 0x4, offset = 0x4, fixed_abs, tag = 'smem constant byte address 0x4 - core index']
  #allocation1 [shape = 'u32[144,128]{1,0:T(1,128)}', space=vmem, size = 0x12000, scoped, tag = 'internal scratch']
  %s0 = inlined_call_operand.vmem [shape: bf16[8,16], index: 0, kind: input, shape index: {}]
  %s1 = inlined_call_operand.vmem [shape: bf16[16,512], index: 1, kind: input, shape index: {}]
  %s2 = inlined_call_operand.vmem [shape: f32[1,512], index: 2, kind: input, shape index: {}]
  %s3 = inlined_call_operand.vmem [shape: bf16[256,256], index: 3, kind: input, shape index: {}]
  %s4 = inlined_call_operand.vmem [shape: f32[1,256], index: 4, kind: input, shape index: {}]
  %s5 = inlined_call_operand.vmem [shape: bf16[256,256], index: 5, kind: input, shape index: {}]
  %s6 = inlined_call_operand.vmem [shape: f32[1,256], index: 6, kind: input, shape index: {}]
  %s7 = inlined_call_operand.vmem [shape: bf16[256,2], index: 7, kind: input, shape index: {}]
  %s8 = inlined_call_operand.vmem [shape: bf16[256,2], index: 8, kind: input, shape index: {}]
  %s9 = inlined_call_operand.vmem [shape: f32[1,2], index: 9, kind: input, shape index: {}]
  %s10 = inlined_call_operand.vmem [shape: f32[8,2], index: 10, kind: output, shape index: {}]
  %s11 = sld [smem:[#allocation0]]
  $region50: #{dropout_twin_critic_forward.1} parent=0
    _
  %s13 = ssub.s32 1, %s11
  %s14 = scalar_select 0, %s13, %s11
  // Predicated region
  $region2: #{dropout_twin_critic_forward.1} parent=0 // pred_check
    _
  $region3: #{dropout_twin_critic_forward.1} parent=0 // pred_check_branch
    %16 = sbr.rel (0) target = $region5
  $region4: #{dropout_twin_critic_forward.1} parent=0 // pred_region
    _
  $region5: #{dropout_twin_critic_forward.1} parent=0 // pred_fallthru
    _
  // Predicated region
  $region6: #{dropout_twin_critic_forward.1} parent=0 // pred_check
    _
  $region7: #{dropout_twin_critic_forward.1} parent=0 // pred_check_branch
    %18 = sbr.rel (0) target = $region9
  $region8: #{dropout_twin_critic_forward.1} parent=0 // pred_region
    _
  $region9: #{dropout_twin_critic_forward.1} parent=0 // pred_fallthru
    _
  // Predicated region
  $region10: #{dropout_twin_critic_forward.1} parent=0 // pred_check
    _
  $region11: #{dropout_twin_critic_forward.1} parent=0 // pred_check_branch
    %20 = sbr.rel (0) target = $region13
  $region12: #{dropout_twin_critic_forward.1} parent=0 // pred_region
    _
  $region13: #{dropout_twin_critic_forward.1} parent=0 // pred_fallthru
    _
  // Predicated region
  $region14: #{dropout_twin_critic_forward.1} parent=0 // pred_check
    _
  $region15: #{dropout_twin_critic_forward.1} parent=0 // pred_check_branch
    %22 = sbr.rel (0) target = $region17
  $region16: #{dropout_twin_critic_forward.1} parent=0 // pred_region
    _
  $region17: #{dropout_twin_critic_forward.1} parent=0 // pred_fallthru
    _
  // Predicated region
  $region18: #{dropout_twin_critic_forward.1} parent=0 // pred_check
    _
  $region19: #{dropout_twin_critic_forward.1} parent=0 // pred_check_branch
    %24 = sbr.rel (0) target = $region21
  $region20: #{dropout_twin_critic_forward.1} parent=0 // pred_region
    _
  $region21: #{dropout_twin_critic_forward.1} parent=0 // pred_fallthru
    _
  // Predicated region
  $region22: #{dropout_twin_critic_forward.1} parent=0 // pred_check
    _
  $region23: #{dropout_twin_critic_forward.1} parent=0 // pred_check_branch
    %26 = sbr.rel (0) target = $region25
  $region24: #{dropout_twin_critic_forward.1} parent=0 // pred_region
    _
  $region25: #{dropout_twin_critic_forward.1} parent=0 // pred_fallthru
    _
  // Predicated region
  $region26: #{dropout_twin_critic_forward.1} parent=0 // pred_check
    _
  $region27: #{dropout_twin_critic_forward.1} parent=0 // pred_check_branch
    %28 = sbr.rel (0) target = $region29
  $region28: #{dropout_twin_critic_forward.1} parent=0 // pred_region
    _
  $region29: #{dropout_twin_critic_forward.1} parent=0 // pred_fallthru
    _
  // Predicated region
  $region30: #{dropout_twin_critic_forward.1} parent=0 // pred_check
    _
  $region31: #{dropout_twin_critic_forward.1} parent=0 // pred_check_branch
    %30 = sbr.rel (0) target = $region33
  $region32: #{dropout_twin_critic_forward.1} parent=0 // pred_region
    _
  $region33: #{dropout_twin_critic_forward.1} parent=0 // pred_fallthru
    _
  // Predicated region
  $region34: #{dropout_twin_critic_forward.1} parent=0 // pred_check
    _
  $region35: #{dropout_twin_critic_forward.1} parent=0 // pred_check_branch
    %32 = sbr.rel (0) target = $region37
  $region36: #{dropout_twin_critic_forward.1} parent=0 // pred_region
    _
  $region37: #{dropout_twin_critic_forward.1} parent=0 // pred_fallthru
    _
  // Predicated region
  $region38: #{dropout_twin_critic_forward.1} parent=0 // pred_check
    _
  $region39: #{dropout_twin_critic_forward.1} parent=0 // pred_check_branch
    %34 = sbr.rel (0) target = $region41
  $region40: #{dropout_twin_critic_forward.1} parent=0 // pred_region
    _
  $region41: #{dropout_twin_critic_forward.1} parent=0 // pred_fallthru
    _
  %v36 = vld [vmem:[%s0] sm:$0xf]
  %v37 = vld [vmem:[%s1] sm:$0xff]
  %v38 = vld [vmem:[%s1 + $0x8] sm:$0xff]
  %v39 = vld [vmem:[%s1 + $0x10] sm:$0xff]
  %v40 = vld [vmem:[%s1 + $0x18] sm:$0xff]
  %v41 = vld [vmem:[%s2] sm:$0xf]
  %v43 = vlaneseq
  %v44 = vshrl.u32 %v43, 7
  %v45 = vsub.s32 0, %v44
  %v46 = vrot.slane %v41, %v45
  %v47 = vlaneseq
  %v48 = vshrl.u32 %v47, 7
  %v49 = vsub.s32 1, %v48
  %v50 = vrot.slane %v41, %v49
  %v51 = vlaneseq
  %v52 = vshrl.u32 %v51, 7
  %v53 = vsub.s32 2, %v52
  %v54 = vrot.slane %v41, %v53
  %v55 = vlaneseq
  %v56 = vshrl.u32 %v55, 7
  %v57 = vsub.s32 3, %v56
  %v58 = vrot.slane %v41, %v57
  %v67 = vunpack.c.l.b16 %v37
  %v68 = vunpack.c.h.b16 %v37
  %v69 = vunpack.c.l.b16 %v38
  %v70 = vunpack.c.h.b16 %v38
  %v71 = vunpack.c.l.b16 %v39
  %v72 = vunpack.c.h.b16 %v39
  %v73 = vunpack.c.l.b16 %v40
  %v74 = vunpack.c.h.b16 %v40
  %v75 = vpack.c.b16 %v71, %v67
  %v76 = vpack.c.b16 %v72, %v68
  %v77 = vpack.c.b16 %v73, %v69
  %v78 = vpack.c.b16 %v74, %v70
  %vm83 = vcmask 130048
  %v85 = vsel %vm83, %v36, 0
  %87 = vmatprep.subr.bf16.mxu0 %v76
  %88 = vmatpush1.bf16.msra.mxu0 %v75
  %89 = vmatprep.subr.bf16.mxu0 0
  %90 = vmatpush1.bf16.msra.mxu0 0
  %91 = vmatprep.subr.bf16.mxu0 0
  %92 = vmatpush1.bf16.msra.mxu0 0
  %93 = vmatprep.subr.bf16.mxu0 0
  %94 = vmatpush1.bf16.msra.mxu0 0
  %95 = vmatprep.subr.bf16.mxu0 0
  %96 = vmatpush1.bf16.msra.mxu0 0
  %97 = vmatprep.subr.bf16.mxu0 0
  %98 = vmatpush1.bf16.msra.mxu0 0
  %99 = vmatprep.subr.bf16.mxu0 0
  %100 = vmatpush1.bf16.msra.mxu0 0
  %101 = vmatprep.subr.bf16.mxu0 0
  %102 = vmatpush1.bf16.msra.mxu0 0
  %103 = vmatprep.subr.bf16.mxu0 0
  %104 = vmatpush1.bf16.msra.mxu0 0
  %105 = vmatprep.subr.bf16.mxu0 0
  %106 = vmatpush1.bf16.msra.mxu0 0
  %107 = vmatprep.subr.bf16.mxu0 0
  %108 = vmatpush1.bf16.msra.mxu0 0
  %109 = vmatprep.subr.bf16.mxu0 0
  %110 = vmatpush1.bf16.msra.mxu0 0
  %111 = vmatprep.subr.bf16.mxu0 0
  %112 = vmatpush1.bf16.msra.mxu0 0
  %113 = vmatprep.subr.bf16.mxu0 0
  %114 = vmatpush1.bf16.msra.mxu0 0
  %115 = vmatprep.subr.bf16.mxu0 0
  %116 = vmatpush1.bf16.msra.mxu0 0
  %117 = vmatprep.subr.bf16.mxu0 0
  %118 = vmatpush1.bf16.msra.mxu0 0
  %119 = vmatprep.mubr.bf16.mxu0 0
  %120 = vmatmul.mubr.bf16.gmra.mrb[0].mxu0 %v85
  %v121 = vpop.f32.mrb[0].mxu0
  %v122 = vadd.f32 %v46, %v121
  %v123 = vpop.f32.mrb[0].mxu0
  %v124 = vadd.f32 %v50, %v123
  %v125 = vpop.f32.mrb[0].mxu0
  %v126 = vpop.f32.mrb[0].mxu0
  %127 = vdwg.mxu0
  %128 = vmatprep.subr.bf16.mxu0 %v78
  %129 = vmatpush1.bf16.msra.mxu0 %v77
  %130 = vmatprep.subr.bf16.mxu0 0
  %131 = vmatpush1.bf16.msra.mxu0 0
  %132 = vmatprep.subr.bf16.mxu0 0
  %133 = vmatpush1.bf16.msra.mxu0 0
  %134 = vmatprep.subr.bf16.mxu0 0
  %135 = vmatpush1.bf16.msra.mxu0 0
  %136 = vmatprep.subr.bf16.mxu0 0
  %137 = vmatpush1.bf16.msra.mxu0 0
  %138 = vmatprep.subr.bf16.mxu0 0
  %139 = vmatpush1.bf16.msra.mxu0 0
  %140 = vmatprep.subr.bf16.mxu0 0
  %141 = vmatpush1.bf16.msra.mxu0 0
  %142 = vmatprep.subr.bf16.mxu0 0
  %143 = vmatpush1.bf16.msra.mxu0 0
  %144 = vmatprep.subr.bf16.mxu0 0
  %145 = vmatpush1.bf16.msra.mxu0 0
  %146 = vmatprep.subr.bf16.mxu0 0
  %147 = vmatpush1.bf16.msra.mxu0 0
  %148 = vmatprep.subr.bf16.mxu0 0
  %149 = vmatpush1.bf16.msra.mxu0 0
  %150 = vmatprep.subr.bf16.mxu0 0
  %151 = vmatpush1.bf16.msra.mxu0 0
  %152 = vmatprep.subr.bf16.mxu0 0
  %153 = vmatpush1.bf16.msra.mxu0 0
  %154 = vmatprep.subr.bf16.mxu0 0
  %155 = vmatpush1.bf16.msra.mxu0 0
  %156 = vmatprep.subr.bf16.mxu0 0
  %157 = vmatpush1.bf16.msra.mxu0 0
  %158 = vmatprep.subr.bf16.mxu0 0
  %159 = vmatpush1.bf16.msra.mxu0 0
  %160 = vmatprep.mubr.bf16.mxu0 0
  %161 = vmatmul.mubr.bf16.gmra.mrb[0].mxu0 %v85
  %v162 = vpop.f32.mrb[0].mxu0
  %v163 = vadd.f32 %v54, %v162
  %v164 = vpop.f32.mrb[0].mxu0
  %v165 = vadd.f32 %v58, %v164
  %v166 = vpop.f32.mrb[0].mxu0
  %v167 = vpop.f32.mrb[0].mxu0
  %168 = vdwg.mxu0
  %v169 = vmax.f32 %v122, 0.0
  %v170 = vmax.f32 %v124, 0.0
  %v171 = vmax.f32 %v163, 0.0
  %v172 = vmax.f32 %v165, 0.0
  %v173 = vpack.c.bf16 %v169, %v169
  %v174 = vpack.c.bf16 %v170, %v170
  %v175 = vld [vmem:[%s3] sm:$0xff]
  %v176 = vld [vmem:[%s3 + $0x8] sm:$0xff]
  %v177 = vld [vmem:[%s3 + $0x10] sm:$0xff]
  %v178 = vld [vmem:[%s3 + $0x18] sm:$0xff]
  %v179 = vld [vmem:[%s3 + $0x20] sm:$0xff]
  %v180 = vld [vmem:[%s3 + $0x28] sm:$0xff]
  %v181 = vld [vmem:[%s3 + $0x30] sm:$0xff]
  %v182 = vld [vmem:[%s3 + $0x38] sm:$0xff]
  %v183 = vld [vmem:[%s3 + $0x40] sm:$0xff]
  %v184 = vld [vmem:[%s3 + $0x48] sm:$0xff]
  %v185 = vld [vmem:[%s3 + $0x50] sm:$0xff]
  %v186 = vld [vmem:[%s3 + $0x58] sm:$0xff]
  %v187 = vld [vmem:[%s3 + $0x60] sm:$0xff]
  %v188 = vld [vmem:[%s3 + $0x68] sm:$0xff]
  %v189 = vld [vmem:[%s3 + $0x70] sm:$0xff]
  %v190 = vld [vmem:[%s3 + $0x78] sm:$0xff]
  %v191 = vld [vmem:[%s3 + $0x80] sm:$0xff]
  %v192 = vld [vmem:[%s3 + $0x88] sm:$0xff]
  %v193 = vld [vmem:[%s3 + $0x90] sm:$0xff]
  %v194 = vld [vmem:[%s3 + $0x98] sm:$0xff]
  %v195 = vld [vmem:[%s3 + $0xa0] sm:$0xff]
  %v196 = vld [vmem:[%s3 + $0xa8] sm:$0xff]
  %v197 = vld [vmem:[%s3 + $0xb0] sm:$0xff]
  %v198 = vld [vmem:[%s3 + $0xb8] sm:$0xff]
  %v199 = vld [vmem:[%s3 + $0xc0] sm:$0xff]
  %v200 = vld [vmem:[%s3 + $0xc8] sm:$0xff]
  %v201 = vld [vmem:[%s3 + $0xd0] sm:$0xff]
  %v202 = vld [vmem:[%s3 + $0xd8] sm:$0xff]
  %v203 = vld [vmem:[%s3 + $0xe0] sm:$0xff]
  %v204 = vld [vmem:[%s3 + $0xe8] sm:$0xff]
  %v205 = vld [vmem:[%s3 + $0xf0] sm:$0xff]
  %v206 = vld [vmem:[%s3 + $0xf8] sm:$0xff]
  %v207 = vld [vmem:[%s4] sm:$0x3]
  %v209 = vlaneseq
  %v210 = vshrl.u32 %v209, 7
  %v211 = vsub.s32 0, %v210
  %v212 = vrot.slane %v207, %v211
  %v213 = vlaneseq
  %v214 = vshrl.u32 %v213, 7
  %v215 = vsub.s32 1, %v214
  %v216 = vrot.slane %v207, %v215
  %v251 = vunpack.c.l.b16 %v175
  %v252 = vunpack.c.h.b16 %v175
  %v253 = vunpack.c.l.b16 %v176
  %v254 = vunpack.c.h.b16 %v176
  %v255 = vunpack.c.l.b16 %v177
  %v256 = vunpack.c.h.b16 %v177
  %v257 = vunpack.c.l.b16 %v178
  %v258 = vunpack.c.h.b16 %v178
  %v259 = vunpack.c.l.b16 %v179
  %v260 = vunpack.c.h.b16 %v179
  %v261 = vunpack.c.l.b16 %v180
  %v262 = vunpack.c.h.b16 %v180
  %v263 = vunpack.c.l.b16 %v181
  %v264 = vunpack.c.h.b16 %v181
  %v265 = vunpack.c.l.b16 %v182
  %v266 = vunpack.c.h.b16 %v182
  %v267 = vunpack.c.l.b16 %v183
  %v268 = vunpack.c.h.b16 %v183
  %v269 = vunpack.c.l.b16 %v184
  %v270 = vunpack.c.h.b16 %v184
  %v271 = vunpack.c.l.b16 %v185
  %v272 = vunpack.c.h.b16 %v185
  %v273 = vunpack.c.l.b16 %v186
  %v274 = vunpack.c.h.b16 %v186
  %v275 = vunpack.c.l.b16 %v187
  %v276 = vunpack.c.h.b16 %v187
  %v277 = vunpack.c.l.b16 %v188
  %v278 = vunpack.c.h.b16 %v188
  %v279 = vunpack.c.l.b16 %v189
  %v280 = vunpack.c.h.b16 %v189
  %v281 = vunpack.c.l.b16 %v190
  %v282 = vunpack.c.h.b16 %v190
  %v283 = vunpack.c.l.b16 %v191
  %v284 = vunpack.c.h.b16 %v191
  %v285 = vunpack.c.l.b16 %v192
  %v286 = vunpack.c.h.b16 %v192
  %v287 = vunpack.c.l.b16 %v193
  %v288 = vunpack.c.h.b16 %v193
  %v289 = vunpack.c.l.b16 %v194
  %v290 = vunpack.c.h.b16 %v194
  %v291 = vunpack.c.l.b16 %v195
  %v292 = vunpack.c.h.b16 %v195
  %v293 = vunpack.c.l.b16 %v196
  %v294 = vunpack.c.h.b16 %v196
  %v295 = vunpack.c.l.b16 %v197
  %v296 = vunpack.c.h.b16 %v197
  %v297 = vunpack.c.l.b16 %v198
  %v298 = vunpack.c.h.b16 %v198
  %v299 = vunpack.c.l.b16 %v199
  %v300 = vunpack.c.h.b16 %v199
  %v301 = vunpack.c.l.b16 %v200
  %v302 = vunpack.c.h.b16 %v200
  %v303 = vunpack.c.l.b16 %v201
  %v304 = vunpack.c.h.b16 %v201
  %v305 = vunpack.c.l.b16 %v202
  %v306 = vunpack.c.h.b16 %v202
  %v307 = vunpack.c.l.b16 %v203
  %v308 = vunpack.c.h.b16 %v203
  %v309 = vunpack.c.l.b16 %v204
  %v310 = vunpack.c.h.b16 %v204
  %v311 = vunpack.c.l.b16 %v205
  %v312 = vunpack.c.h.b16 %v205
  %v313 = vunpack.c.l.b16 %v206
  %v314 = vunpack.c.h.b16 %v206
  %v315 = vpack.c.b16 %v253, %v251
  %v316 = vpack.c.b16 %v254, %v252
  %v317 = vpack.c.b16 %v257, %v255
  %v318 = vpack.c.b16 %v258, %v256
  %v319 = vpack.c.b16 %v261, %v259
  %v320 = vpack.c.b16 %v262, %v260
  %v321 = vpack.c.b16 %v265, %v263
  %v322 = vpack.c.b16 %v266, %v264
  %v323 = vpack.c.b16 %v269, %v267
  %v324 = vpack.c.b16 %v270, %v268
  %v325 = vpack.c.b16 %v273, %v271
  %v326 = vpack.c.b16 %v274, %v272
  %v327 = vpack.c.b16 %v277, %v275
  %v328 = vpack.c.b16 %v278, %v276
  %v329 = vpack.c.b16 %v281, %v279
  %v330 = vpack.c.b16 %v282, %v280
  %v331 = vpack.c.b16 %v285, %v283
  %v332 = vpack.c.b16 %v286, %v284
  %v333 = vpack.c.b16 %v289, %v287
  %v334 = vpack.c.b16 %v290, %v288
  %v335 = vpack.c.b16 %v293, %v291
  %v336 = vpack.c.b16 %v294, %v292
  %v337 = vpack.c.b16 %v297, %v295
  %v338 = vpack.c.b16 %v298, %v296
  %v339 = vpack.c.b16 %v301, %v299
  %v340 = vpack.c.b16 %v302, %v300
  %v341 = vpack.c.b16 %v305, %v303
  %v342 = vpack.c.b16 %v306, %v304
  %v343 = vpack.c.b16 %v309, %v307
  %v344 = vpack.c.b16 %v310, %v308
  %v345 = vpack.c.b16 %v313, %v311
  %v346 = vpack.c.b16 %v314, %v312
  %379 = vmatprep.subr.bf16.mxu0 %v316
  %380 = vmatpush1.bf16.msra.mxu0 %v315
  %381 = vmatprep.subr.bf16.mxu0 %v318
  %382 = vmatpush1.bf16.msra.mxu0 %v317
  %383 = vmatprep.subr.bf16.mxu0 %v320
  %384 = vmatpush1.bf16.msra.mxu0 %v319
  %385 = vmatprep.subr.bf16.mxu0 %v322
  %386 = vmatpush1.bf16.msra.mxu0 %v321
  %387 = vmatprep.subr.bf16.mxu0 %v324
  %388 = vmatpush1.bf16.msra.mxu0 %v323
  %389 = vmatprep.subr.bf16.mxu0 %v326
  %390 = vmatpush1.bf16.msra.mxu0 %v325
  %391 = vmatprep.subr.bf16.mxu0 %v328
  %392 = vmatpush1.bf16.msra.mxu0 %v327
  %393 = vmatprep.subr.bf16.mxu0 %v330
  %394 = vmatpush1.bf16.msra.mxu0 %v329
  %395 = vmatprep.subr.bf16.mxu0 %v332
  %396 = vmatpush1.bf16.msra.mxu0 %v331
  %397 = vmatprep.subr.bf16.mxu0 %v334
  %398 = vmatpush1.bf16.msra.mxu0 %v333
  %399 = vmatprep.subr.bf16.mxu0 %v336
  %400 = vmatpush1.bf16.msra.mxu0 %v335
  %401 = vmatprep.subr.bf16.mxu0 %v338
  %402 = vmatpush1.bf16.msra.mxu0 %v337
  %403 = vmatprep.subr.bf16.mxu0 %v340
  %404 = vmatpush1.bf16.msra.mxu0 %v339
  %405 = vmatprep.subr.bf16.mxu0 %v342
  %406 = vmatpush1.bf16.msra.mxu0 %v341
  %407 = vmatprep.subr.bf16.mxu0 %v344
  %408 = vmatpush1.bf16.msra.mxu0 %v343
  %409 = vmatprep.subr.bf16.mxu0 %v346
  %410 = vmatpush1.bf16.msra.mxu0 %v345
  %411 = vmatprep.mubr.bf16.mxu0 %v174
  %412 = vmatmul.mubr.bf16.gmra.mrb[0].mxu0 %v173
  %v413 = vpop.f32.mrb[0].mxu0
  %v414 = vadd.f32 %v212, %v413
  %v415 = vpop.f32.mrb[0].mxu0
  %v416 = vadd.f32 %v216, %v415
  %v417 = vpop.f32.mrb[0].mxu0
  %v418 = vpop.f32.mrb[0].mxu0
  %419 = vdwg.mxu0
  %v420 = vpack.c.bf16 %v171, %v171
  %v421 = vpack.c.bf16 %v172, %v172
  %v422 = vld [vmem:[%s5] sm:$0xff]
  %v423 = vld [vmem:[%s5 + $0x8] sm:$0xff]
  %v424 = vld [vmem:[%s5 + $0x10] sm:$0xff]
  %v425 = vld [vmem:[%s5 + $0x18] sm:$0xff]
  %v426 = vld [vmem:[%s5 + $0x20] sm:$0xff]
  %v427 = vld [vmem:[%s5 + $0x28] sm:$0xff]
  %v428 = vld [vmem:[%s5 + $0x30] sm:$0xff]
  %v429 = vld [vmem:[%s5 + $0x38] sm:$0xff]
  %v430 = vld [vmem:[%s5 + $0x40] sm:$0xff]
  %v431 = vld [vmem:[%s5 + $0x48] sm:$0xff]
  %v432 = vld [vmem:[%s5 + $0x50] sm:$0xff]
  %v433 = vld [vmem:[%s5 + $0x58] sm:$0xff]
  %v434 = vld [vmem:[%s5 + $0x60] sm:$0xff]
  %v435 = vld [vmem:[%s5 + $0x68] sm:$0xff]
  %v436 = vld [vmem:[%s5 + $0x70] sm:$0xff]
  %v437 = vld [vmem:[%s5 + $0x78] sm:$0xff]
  %v438 = vld [vmem:[%s5 + $0x80] sm:$0xff]
  %v439 = vld [vmem:[%s5 + $0x88] sm:$0xff]
  %v440 = vld [vmem:[%s5 + $0x90] sm:$0xff]
  %v441 = vld [vmem:[%s5 + $0x98] sm:$0xff]
  %v442 = vld [vmem:[%s5 + $0xa0] sm:$0xff]
  %v443 = vld [vmem:[%s5 + $0xa8] sm:$0xff]
  %v444 = vld [vmem:[%s5 + $0xb0] sm:$0xff]
  %v445 = vld [vmem:[%s5 + $0xb8] sm:$0xff]
  %v446 = vld [vmem:[%s5 + $0xc0] sm:$0xff]
  %v447 = vld [vmem:[%s5 + $0xc8] sm:$0xff]
  %v448 = vld [vmem:[%s5 + $0xd0] sm:$0xff]
  %v449 = vld [vmem:[%s5 + $0xd8] sm:$0xff]
  %v450 = vld [vmem:[%s5 + $0xe0] sm:$0xff]
  %v451 = vld [vmem:[%s5 + $0xe8] sm:$0xff]
  %v452 = vld [vmem:[%s5 + $0xf0] sm:$0xff]
  %v453 = vld [vmem:[%s5 + $0xf8] sm:$0xff]
  %v454 = vld [vmem:[%s6] sm:$0x3]
  %v456 = vlaneseq
  %v457 = vshrl.u32 %v456, 7
  %v458 = vsub.s32 0, %v457
  %v459 = vrot.slane %v454, %v458
  %v460 = vlaneseq
  %v461 = vshrl.u32 %v460, 7
  %v462 = vsub.s32 1, %v461
  %v463 = vrot.slane %v454, %v462
  %v498 = vunpack.c.l.b16 %v422
  %v499 = vunpack.c.h.b16 %v422
  %v500 = vunpack.c.l.b16 %v423
  %v501 = vunpack.c.h.b16 %v423
  %v502 = vunpack.c.l.b16 %v424
  %v503 = vunpack.c.h.b16 %v424
  %v504 = vunpack.c.l.b16 %v425
  %v505 = vunpack.c.h.b16 %v425
  %v506 = vunpack.c.l.b16 %v426
  %v507 = vunpack.c.h.b16 %v426
  %v508 = vunpack.c.l.b16 %v427
  %v509 = vunpack.c.h.b16 %v427
  %v510 = vunpack.c.l.b16 %v428
  %v511 = vunpack.c.h.b16 %v428
  %v512 = vunpack.c.l.b16 %v429
  %v513 = vunpack.c.h.b16 %v429
  %v514 = vunpack.c.l.b16 %v430
  %v515 = vunpack.c.h.b16 %v430
  %v516 = vunpack.c.l.b16 %v431
  %v517 = vunpack.c.h.b16 %v431
  %v518 = vunpack.c.l.b16 %v432
  %v519 = vunpack.c.h.b16 %v432
  %v520 = vunpack.c.l.b16 %v433
  %v521 = vunpack.c.h.b16 %v433
  %v522 = vunpack.c.l.b16 %v434
  %v523 = vunpack.c.h.b16 %v434
  %v524 = vunpack.c.l.b16 %v435
  %v525 = vunpack.c.h.b16 %v435
  %v526 = vunpack.c.l.b16 %v436
  %v527 = vunpack.c.h.b16 %v436
  %v528 = vunpack.c.l.b16 %v437
  %v529 = vunpack.c.h.b16 %v437
  %v530 = vunpack.c.l.b16 %v438
  %v531 = vunpack.c.h.b16 %v438
  %v532 = vunpack.c.l.b16 %v439
  %v533 = vunpack.c.h.b16 %v439
  %v534 = vunpack.c.l.b16 %v440
  %v535 = vunpack.c.h.b16 %v440
  %v536 = vunpack.c.l.b16 %v441
  %v537 = vunpack.c.h.b16 %v441
  %v538 = vunpack.c.l.b16 %v442
  %v539 = vunpack.c.h.b16 %v442
  %v540 = vunpack.c.l.b16 %v443
  %v541 = vunpack.c.h.b16 %v443
  %v542 = vunpack.c.l.b16 %v444
  %v543 = vunpack.c.h.b16 %v444
  %v544 = vunpack.c.l.b16 %v445
  %v545 = vunpack.c.h.b16 %v445
  %v546 = vunpack.c.l.b16 %v446
  %v547 = vunpack.c.h.b16 %v446
  %v548 = vunpack.c.l.b16 %v447
  %v549 = vunpack.c.h.b16 %v447
  %v550 = vunpack.c.l.b16 %v448
  %v551 = vunpack.c.h.b16 %v448
  %v552 = vunpack.c.l.b16 %v449
  %v553 = vunpack.c.h.b16 %v449
  %v554 = vunpack.c.l.b16 %v450
  %v555 = vunpack.c.h.b16 %v450
  %v556 = vunpack.c.l.b16 %v451
  %v557 = vunpack.c.h.b16 %v451
  %v558 = vunpack.c.l.b16 %v452
  %v559 = vunpack.c.h.b16 %v452
  %v560 = vunpack.c.l.b16 %v453
  %v561 = vunpack.c.h.b16 %v453
  %v562 = vpack.c.b16 %v500, %v498
  %v563 = vpack.c.b16 %v501, %v499
  %v564 = vpack.c.b16 %v504, %v502
  %v565 = vpack.c.b16 %v505, %v503
  %v566 = vpack.c.b16 %v508, %v506
  %v567 = vpack.c.b16 %v509, %v507
  %v568 = vpack.c.b16 %v512, %v510
  %v569 = vpack.c.b16 %v513, %v511
  %v570 = vpack.c.b16 %v516, %v514
  %v571 = vpack.c.b16 %v517, %v515
  %v572 = vpack.c.b16 %v520, %v518
  %v573 = vpack.c.b16 %v521, %v519
  %v574 = vpack.c.b16 %v524, %v522
  %v575 = vpack.c.b16 %v525, %v523
  %v576 = vpack.c.b16 %v528, %v526
  %v577 = vpack.c.b16 %v529, %v527
  %v578 = vpack.c.b16 %v532, %v530
  %v579 = vpack.c.b16 %v533, %v531
  %v580 = vpack.c.b16 %v536, %v534
  %v581 = vpack.c.b16 %v537, %v535
  %v582 = vpack.c.b16 %v540, %v538
  %v583 = vpack.c.b16 %v541, %v539
  %v584 = vpack.c.b16 %v544, %v542
  %v585 = vpack.c.b16 %v545, %v543
  %v586 = vpack.c.b16 %v548, %v546
  %v587 = vpack.c.b16 %v549, %v547
  %v588 = vpack.c.b16 %v552, %v550
  %v589 = vpack.c.b16 %v553, %v551
  %v590 = vpack.c.b16 %v556, %v554
  %v591 = vpack.c.b16 %v557, %v555
  %v592 = vpack.c.b16 %v560, %v558
  %v593 = vpack.c.b16 %v561, %v559
  %626 = vmatprep.subr.bf16.mxu0 %v563
  %627 = vmatpush1.bf16.msra.mxu0 %v562
  %628 = vmatprep.subr.bf16.mxu0 %v565
  %629 = vmatpush1.bf16.msra.mxu0 %v564
  %630 = vmatprep.subr.bf16.mxu0 %v567
  %631 = vmatpush1.bf16.msra.mxu0 %v566
  %632 = vmatprep.subr.bf16.mxu0 %v569
  %633 = vmatpush1.bf16.msra.mxu0 %v568
  %634 = vmatprep.subr.bf16.mxu0 %v571
  %635 = vmatpush1.bf16.msra.mxu0 %v570
  %636 = vmatprep.subr.bf16.mxu0 %v573
  %637 = vmatpush1.bf16.msra.mxu0 %v572
  %638 = vmatprep.subr.bf16.mxu0 %v575
  %639 = vmatpush1.bf16.msra.mxu0 %v574
  %640 = vmatprep.subr.bf16.mxu0 %v577
  %641 = vmatpush1.bf16.msra.mxu0 %v576
  %642 = vmatprep.subr.bf16.mxu0 %v579
  %643 = vmatpush1.bf16.msra.mxu0 %v578
  %644 = vmatprep.subr.bf16.mxu0 %v581
  %645 = vmatpush1.bf16.msra.mxu0 %v580
  %646 = vmatprep.subr.bf16.mxu0 %v583
  %647 = vmatpush1.bf16.msra.mxu0 %v582
  %648 = vmatprep.subr.bf16.mxu0 %v585
  %649 = vmatpush1.bf16.msra.mxu0 %v584
  %650 = vmatprep.subr.bf16.mxu0 %v587
  %651 = vmatpush1.bf16.msra.mxu0 %v586
  %652 = vmatprep.subr.bf16.mxu0 %v589
  %653 = vmatpush1.bf16.msra.mxu0 %v588
  %654 = vmatprep.subr.bf16.mxu0 %v591
  %655 = vmatpush1.bf16.msra.mxu0 %v590
  %656 = vmatprep.subr.bf16.mxu0 %v593
  %657 = vmatpush1.bf16.msra.mxu0 %v592
  %658 = vmatprep.mubr.bf16.mxu0 %v421
  %659 = vmatmul.mubr.bf16.gmra.mrb[0].mxu0 %v420
  %v660 = vpop.f32.mrb[0].mxu0
  %v661 = vadd.f32 %v459, %v660
  %v662 = vpop.f32.mrb[0].mxu0
  %v663 = vadd.f32 %v463, %v662
  %v664 = vpop.f32.mrb[0].mxu0
  %v665 = vpop.f32.mrb[0].mxu0
  %666 = vdwg.mxu0
  %v667 = vmax.f32 %v661, 0.0
  %v668 = vmax.f32 %v663, 0.0
  %v669 = vmax.f32 %v414, 0.0
  %v670 = vmax.f32 %v416, 0.0
  %v671 = vpack.c.bf16 %v669, %v669
  %v672 = vpack.c.bf16 %v670, %v670
  %v673 = vld [vmem:[%s7] sm:$0xf]
  %v674 = vld [vmem:[%s7 + $0x4] sm:$0xf]
  %v675 = vld [vmem:[%s7 + $0x8] sm:$0xf]
  %v676 = vld [vmem:[%s7 + $0xc] sm:$0xf]
  %v677 = vld [vmem:[%s7 + $0x10] sm:$0xf]
  %v678 = vld [vmem:[%s7 + $0x14] sm:$0xf]
  %v679 = vld [vmem:[%s7 + $0x18] sm:$0xf]
  %v680 = vld [vmem:[%s7 + $0x1c] sm:$0xf]
  %v681 = vld [vmem:[%s7 + $0x20] sm:$0xf]
  %v682 = vld [vmem:[%s7 + $0x24] sm:$0xf]
  %v683 = vld [vmem:[%s7 + $0x28] sm:$0xf]
  %v684 = vld [vmem:[%s7 + $0x2c] sm:$0xf]
  %v685 = vld [vmem:[%s7 + $0x30] sm:$0xf]
  %v686 = vld [vmem:[%s7 + $0x34] sm:$0xf]
  %v687 = vld [vmem:[%s7 + $0x38] sm:$0xf]
  %v688 = vld [vmem:[%s7 + $0x3c] sm:$0xf]
  %v689 = vld [vmem:[%s7 + $0x40] sm:$0xf]
  %v690 = vld [vmem:[%s7 + $0x44] sm:$0xf]
  %v691 = vld [vmem:[%s7 + $0x48] sm:$0xf]
  %v692 = vld [vmem:[%s7 + $0x4c] sm:$0xf]
  %v693 = vld [vmem:[%s7 + $0x50] sm:$0xf]
  %v694 = vld [vmem:[%s7 + $0x54] sm:$0xf]
  %v695 = vld [vmem:[%s7 + $0x58] sm:$0xf]
  %v696 = vld [vmem:[%s7 + $0x5c] sm:$0xf]
  %v697 = vld [vmem:[%s7 + $0x60] sm:$0xf]
  %v698 = vld [vmem:[%s7 + $0x64] sm:$0xf]
  %v699 = vld [vmem:[%s7 + $0x68] sm:$0xf]
  %v700 = vld [vmem:[%s7 + $0x6c] sm:$0xf]
  %v701 = vld [vmem:[%s7 + $0x70] sm:$0xf]
  %v702 = vld [vmem:[%s7 + $0x74] sm:$0xf]
  %v703 = vld [vmem:[%s7 + $0x78] sm:$0xf]
  %v704 = vld [vmem:[%s7 + $0x7c] sm:$0xf]
  %v705 = vpack.c.bf16 %v667, %v667
  %v706 = vpack.c.bf16 %v668, %v668
  %v707 = vld [vmem:[%s8] sm:$0xf]
  %v708 = vld [vmem:[%s8 + $0x4] sm:$0xf]
  %v709 = vld [vmem:[%s8 + $0x8] sm:$0xf]
  %v710 = vld [vmem:[%s8 + $0xc] sm:$0xf]
  %v711 = vld [vmem:[%s8 + $0x10] sm:$0xf]
  %v712 = vld [vmem:[%s8 + $0x14] sm:$0xf]
  %v713 = vld [vmem:[%s8 + $0x18] sm:$0xf]
  %v714 = vld [vmem:[%s8 + $0x1c] sm:$0xf]
  %v715 = vld [vmem:[%s8 + $0x20] sm:$0xf]
  %v716 = vld [vmem:[%s8 + $0x24] sm:$0xf]
  %v717 = vld [vmem:[%s8 + $0x28] sm:$0xf]
  %v718 = vld [vmem:[%s8 + $0x2c] sm:$0xf]
  %v719 = vld [vmem:[%s8 + $0x30] sm:$0xf]
  %v720 = vld [vmem:[%s8 + $0x34] sm:$0xf]
  %v721 = vld [vmem:[%s8 + $0x38] sm:$0xf]
  %v722 = vld [vmem:[%s8 + $0x3c] sm:$0xf]
  %v723 = vld [vmem:[%s8 + $0x40] sm:$0xf]
  %v724 = vld [vmem:[%s8 + $0x44] sm:$0xf]
  %v725 = vld [vmem:[%s8 + $0x48] sm:$0xf]
  %v726 = vld [vmem:[%s8 + $0x4c] sm:$0xf]
  %v727 = vld [vmem:[%s8 + $0x50] sm:$0xf]
  %v728 = vld [vmem:[%s8 + $0x54] sm:$0xf]
  %v729 = vld [vmem:[%s8 + $0x58] sm:$0xf]
  %v730 = vld [vmem:[%s8 + $0x5c] sm:$0xf]
  %v731 = vld [vmem:[%s8 + $0x60] sm:$0xf]
  %v732 = vld [vmem:[%s8 + $0x64] sm:$0xf]
  %v733 = vld [vmem:[%s8 + $0x68] sm:$0xf]
  %v734 = vld [vmem:[%s8 + $0x6c] sm:$0xf]
  %v735 = vld [vmem:[%s8 + $0x70] sm:$0xf]
  %v736 = vld [vmem:[%s8 + $0x74] sm:$0xf]
  %v737 = vld [vmem:[%s8 + $0x78] sm:$0xf]
  %v738 = vld [vmem:[%s8 + $0x7c] sm:$0xf]
  %v771 = vunpack.c.l.b16 %v707
  %v772 = vunpack.c.l.b16 %v708
  %v773 = vunpack.c.l.b16 %v709
  %v774 = vunpack.c.l.b16 %v710
  %v775 = vunpack.c.l.b16 %v711
  %v776 = vunpack.c.l.b16 %v712
  %v777 = vunpack.c.l.b16 %v713
  %v778 = vunpack.c.l.b16 %v714
  %v779 = vunpack.c.l.b16 %v715
  %v780 = vunpack.c.l.b16 %v716
  %v781 = vunpack.c.l.b16 %v717
  %v782 = vunpack.c.l.b16 %v718
  %v783 = vunpack.c.l.b16 %v719
  %v784 = vunpack.c.l.b16 %v720
  %v785 = vunpack.c.l.b16 %v721
  %v786 = vunpack.c.l.b16 %v722
  %v787 = vunpack.c.l.b16 %v723
  %v788 = vunpack.c.l.b16 %v724
  %v789 = vunpack.c.l.b16 %v725
  %v790 = vunpack.c.l.b16 %v726
  %v791 = vunpack.c.l.b16 %v727
  %v792 = vunpack.c.l.b16 %v728
  %v793 = vunpack.c.l.b16 %v729
  %v794 = vunpack.c.l.b16 %v730
  %v795 = vunpack.c.l.b16 %v731
  %v796 = vunpack.c.l.b16 %v732
  %v797 = vunpack.c.l.b16 %v733
  %v798 = vunpack.c.l.b16 %v734
  %v799 = vunpack.c.l.b16 %v735
  %v800 = vunpack.c.l.b16 %v736
  %v801 = vunpack.c.l.b16 %v737
  %v802 = vunpack.c.l.b16 %v738
  %v803 = vpack.c.b16 %v772, %v771
  %v804 = vpack.c.b16 %v774, %v773
  %v805 = vpack.c.b16 %v776, %v775
  %v806 = vpack.c.b16 %v778, %v777
  %v807 = vpack.c.b16 %v780, %v779
  %v808 = vpack.c.b16 %v782, %v781
  %v809 = vpack.c.b16 %v784, %v783
  %v810 = vpack.c.b16 %v786, %v785
  %v811 = vpack.c.b16 %v788, %v787
  %v812 = vpack.c.b16 %v790, %v789
  %v813 = vpack.c.b16 %v792, %v791
  %v814 = vpack.c.b16 %v794, %v793
  %v815 = vpack.c.b16 %v796, %v795
  %v816 = vpack.c.b16 %v798, %v797
  %v817 = vpack.c.b16 %v800, %v799
  %v818 = vpack.c.b16 %v802, %v801
  %835 = vmatprep.subr.bf16.mxu0 0
  %836 = vmatpush1.bf16.msra.mxu0 %v803
  %837 = vmatprep.subr.bf16.mxu0 0
  %838 = vmatpush1.bf16.msra.mxu0 %v804
  %839 = vmatprep.subr.bf16.mxu0 0
  %840 = vmatpush1.bf16.msra.mxu0 %v805
  %841 = vmatprep.subr.bf16.mxu0 0
  %842 = vmatpush1.bf16.msra.mxu0 %v806
  %843 = vmatprep.subr.bf16.mxu0 0
  %844 = vmatpush1.bf16.msra.mxu0 %v807
  %845 = vmatprep.subr.bf16.mxu0 0
  %846 = vmatpush1.bf16.msra.mxu0 %v808
  %847 = vmatprep.subr.bf16.mxu0 0
  %848 = vmatpush1.bf16.msra.mxu0 %v809
  %849 = vmatprep.subr.bf16.mxu0 0
  %850 = vmatpush1.bf16.msra.mxu0 %v810
  %851 = vmatprep.subr.bf16.mxu0 0
  %852 = vmatpush1.bf16.msra.mxu0 %v811
  %853 = vmatprep.subr.bf16.mxu0 0
  %854 = vmatpush1.bf16.msra.mxu0 %v812
  %855 = vmatprep.subr.bf16.mxu0 0
  %856 = vmatpush1.bf16.msra.mxu0 %v813
  %857 = vmatprep.subr.bf16.mxu0 0
  %858 = vmatpush1.bf16.msra.mxu0 %v814
  %859 = vmatprep.subr.bf16.mxu0 0
  %860 = vmatpush1.bf16.msra.mxu0 %v815
  %861 = vmatprep.subr.bf16.mxu0 0
  %862 = vmatpush1.bf16.msra.mxu0 %v816
  %863 = vmatprep.subr.bf16.mxu0 0
  %864 = vmatpush1.bf16.msra.mxu0 %v817
  %865 = vmatprep.subr.bf16.mxu0 0
  %866 = vmatpush1.bf16.msra.mxu0 %v818
  %867 = vmatprep.mubr.bf16.mxu0 %v706
  %868 = vmatmul.mubr.bf16.gmra.mrb[0].mxu0 %v705
  %v869 = vpop.f32.mrb[0].mxu0
  %v870 = vadd.f32 0.0, %v869
  %v871 = vpop.f32.mrb[0].mxu0
  %v872 = vpop.f32.mrb[0].mxu0
  %v873 = vpop.f32.mrb[0].mxu0
  %874 = vdwg.mxu0
  %v907 = vunpack.c.l.b16 %v673
  %v908 = vunpack.c.l.b16 %v674
  %v909 = vunpack.c.l.b16 %v675
  %v910 = vunpack.c.l.b16 %v676
  %v911 = vunpack.c.l.b16 %v677
  %v912 = vunpack.c.l.b16 %v678
  %v913 = vunpack.c.l.b16 %v679
  %v914 = vunpack.c.l.b16 %v680
  %v915 = vunpack.c.l.b16 %v681
  %v916 = vunpack.c.l.b16 %v682
  %v917 = vunpack.c.l.b16 %v683
  %v918 = vunpack.c.l.b16 %v684
  %v919 = vunpack.c.l.b16 %v685
  %v920 = vunpack.c.l.b16 %v686
  %v921 = vunpack.c.l.b16 %v687
  %v922 = vunpack.c.l.b16 %v688
  %v923 = vunpack.c.l.b16 %v689
  %v924 = vunpack.c.l.b16 %v690
  %v925 = vunpack.c.l.b16 %v691
  %v926 = vunpack.c.l.b16 %v692
  %v927 = vunpack.c.l.b16 %v693
  %v928 = vunpack.c.l.b16 %v694
  %v929 = vunpack.c.l.b16 %v695
  %v930 = vunpack.c.l.b16 %v696
  %v931 = vunpack.c.l.b16 %v697
  %v932 = vunpack.c.l.b16 %v698
  %v933 = vunpack.c.l.b16 %v699
  %v934 = vunpack.c.l.b16 %v700
  %v935 = vunpack.c.l.b16 %v701
  %v936 = vunpack.c.l.b16 %v702
  %v937 = vunpack.c.l.b16 %v703
  %v938 = vunpack.c.l.b16 %v704
  %v939 = vpack.c.b16 %v908, %v907
  %v940 = vpack.c.b16 %v910, %v909
  %v941 = vpack.c.b16 %v912, %v911
  %v942 = vpack.c.b16 %v914, %v913
  %v943 = vpack.c.b16 %v916, %v915
  %v944 = vpack.c.b16 %v918, %v917
  %v945 = vpack.c.b16 %v920, %v919
  %v946 = vpack.c.b16 %v922, %v921
  %v947 = vpack.c.b16 %v924, %v923
  %v948 = vpack.c.b16 %v926, %v925
  %v949 = vpack.c.b16 %v928, %v927
  %v950 = vpack.c.b16 %v930, %v929
  %v951 = vpack.c.b16 %v932, %v931
  %v952 = vpack.c.b16 %v934, %v933
  %v953 = vpack.c.b16 %v936, %v935
  %v954 = vpack.c.b16 %v938, %v937
  %971 = vmatprep.subr.bf16.mxu0 0
  %972 = vmatpush1.bf16.msra.mxu0 %v939
  %973 = vmatprep.subr.bf16.mxu0 0
  %974 = vmatpush1.bf16.msra.mxu0 %v940
  %975 = vmatprep.subr.bf16.mxu0 0
  %976 = vmatpush1.bf16.msra.mxu0 %v941
  %977 = vmatprep.subr.bf16.mxu0 0
  %978 = vmatpush1.bf16.msra.mxu0 %v942
  %979 = vmatprep.subr.bf16.mxu0 0
  %980 = vmatpush1.bf16.msra.mxu0 %v943
  %981 = vmatprep.subr.bf16.mxu0 0
  %982 = vmatpush1.bf16.msra.mxu0 %v944
  %983 = vmatprep.subr.bf16.mxu0 0
  %984 = vmatpush1.bf16.msra.mxu0 %v945
  %985 = vmatprep.subr.bf16.mxu0 0
  %986 = vmatpush1.bf16.msra.mxu0 %v946
  %987 = vmatprep.subr.bf16.mxu0 0
  %988 = vmatpush1.bf16.msra.mxu0 %v947
  %989 = vmatprep.subr.bf16.mxu0 0
  %990 = vmatpush1.bf16.msra.mxu0 %v948
  %991 = vmatprep.subr.bf16.mxu0 0
  %992 = vmatpush1.bf16.msra.mxu0 %v949
  %993 = vmatprep.subr.bf16.mxu0 0
  %994 = vmatpush1.bf16.msra.mxu0 %v950
  %995 = vmatprep.subr.bf16.mxu0 0
  %996 = vmatpush1.bf16.msra.mxu0 %v951
  %997 = vmatprep.subr.bf16.mxu0 0
  %998 = vmatpush1.bf16.msra.mxu0 %v952
  %999 = vmatprep.subr.bf16.mxu0 0
  %1000 = vmatpush1.bf16.msra.mxu0 %v953
  %1001 = vmatprep.subr.bf16.mxu0 0
  %1002 = vmatpush1.bf16.msra.mxu0 %v954
  %1003 = vmatprep.mubr.bf16.mxu0 %v672
  %1004 = vmatmul.mubr.bf16.gmra.mrb[0].mxu0 %v671
  %v1005 = vpop.f32.mrb[0].mxu0
  %v1006 = vadd.f32 %v870, %v1005
  %v1007 = vpop.f32.mrb[0].mxu0
  %v1008 = vpop.f32.mrb[0].mxu0
  %v1009 = vpop.f32.mrb[0].mxu0
  %1010 = vdwg.mxu0
  %v1011 = vld [vmem:[%s9] sm:$0x1]
  %v1013 = vlaneseq
  %v1014 = vshrl.u32 %v1013, 7
  %v1015 = vsub.s32 0, %v1014
  %v1016 = vrot.slane %v1011, %v1015
  %v1018 = vadd.f32 %v1006, %v1016
  %vm1019 = vcmask 15360
  %1020 = vst.msk [vmem:[%s10] sm:$0xff] %vm1019, %v1018
  // Predicated region
  $region42: #{dropout_twin_critic_forward.1} parent=0 // pred_check
    _
  $region43: #{dropout_twin_critic_forward.1} parent=0 // pred_check_branch
    %1022 = sbr.rel (0) target = $region45
  $region44: #{dropout_twin_critic_forward.1} parent=0 // pred_region
    _
  $region45: #{dropout_twin_critic_forward.1} parent=0 // pred_fallthru
    _
  // Predicated region
  $region46: #{dropout_twin_critic_forward.1} parent=0 // pred_check
    _
  $region47: #{dropout_twin_critic_forward.1} parent=0 // pred_check_branch
    %1024 = sbr.rel (0) target = $region49
  $region48: #{dropout_twin_critic_forward.1} parent=0 // pred_region
    _
  $region49: #{dropout_twin_critic_forward.1} parent=0 // pred_fallthru
    _

</llo_original>
